<compile_context>
chip_gen: v7x
topology: tpu7x:2x2x1
jax: 0.10.0
libtpu: 0.0.40
codegen_flags: <defaults>
</compile_context>

<pallas_src>
import jax
import jax.numpy as jnp
from jax import lax
from jax.experimental import pallas as pl
from jax.experimental.pallas import tpu as pltpu


# ----------------------------------------------------------------------------
# Kernel: one fused multiply-add per element (the collapsed affine chain).
# ----------------------------------------------------------------------------
def _affine_kernel(x_ref, a_ref, b_ref, y_ref):
    # x_ref: (tile_b, tile_r, 128) lane-dense rows of x
    # a_ref / b_ref: (tile_b, 1, 128) collapsed per-batch scale / shift
    y_ref[...] = (x_ref[...] * a_ref[...] + b_ref[...]).astype(y_ref.dtype)


# ----------------------------------------------------------------------------
# Generation-aware tiling.
# ----------------------------------------------------------------------------
def _vmem_capacity_bytes():
    try:
        info = pltpu.get_tpu_info()
        cap = getattr(info, "vmem_capacity_bytes", None)
        if cap:
            return int(cap)
    except Exception:
        pass
    return 64 << 20  # conservative fallback (v7x physical VMEM)


def _block_budget():
    """Returns (per-block byte cap for the x/y block, vmem_limit_bytes or None)."""
    cap = _vmem_capacity_bytes()
    if cap >= (100 << 20):          # v5e / v6e: 128 MiB physical VMEM
        return 8 << 20, 64 << 20    # big streaming blocks, raised scoped limit
    return 4 << 20, None            # v7x (64 MiB physical): stay under 32 MiB scoped


def _choose_tiles(batch, rpb, block_cap_bytes):
    """Pick (tile_b, tile_r) so tile_b*tile_r*128*4 <= block_cap_bytes, with
    tile_r a multiple of 8 or the full rpb extent (the (8,128) rule applies to
    the last two block dims; tile_b is a leading dim and is unconstrained)."""
    row_bytes = 128 * 4
    max_rows_per_block = max(1, block_cap_bytes // row_bytes)
    if rpb <= max_rows_per_block:
        tile_r = rpb                                  # full extent -> always legal
    else:
        tile_r = max(8, (max_rows_per_block // 8) * 8)
    tile_b = max(1, min(batch, max_rows_per_block // tile_r))
    return tile_b, tile_r


# ----------------------------------------------------------------------------
# Pallas wrapper: y = x * a + b  with lane-dense (..., 128) layout.
# ----------------------------------------------------------------------------
def _apply_affine_pallas(x, a, b):
    """x: (B, N, D) f32; a, b: (B, D) f32 (collapsed chain).  Returns (B, N, D)."""
    B, N, D = x.shape
    assert 128 % D == 0 and (N * D) % 128 == 0, (
        "lane-dense fast path requires 128 % D == 0 and (N*D) % 128 == 0")

    reps = 128 // D
    rpb = (N * D) // 128                         # 128-lane rows per batch element
    x3 = x.reshape(B, rpb, 128)                  # lane-dense view of x
    # Lane-tile the compact (B, D) scale/shift to width 128; keep them as
    # (B, 1, 128) so the batch tile is a leading (unconstrained) block dim.
    a_lane = jnp.tile(a, (1, reps))[:, None, :]  # (B, 1, 128)
    b_lane = jnp.tile(b, (1, reps))[:, None, :]

    block_cap, vmem_limit = _block_budget()
    tile_b, tile_r = _choose_tiles(B, rpb, block_cap)
    grid = (pl.cdiv(B, tile_b), pl.cdiv(rpb, tile_r))

    cost = pl.CostEstimate(
        flops=2 * B * rpb * 128,                         # one mul + one add / elem
        transcendentals=0,                               # exp hoisted to XLA
        bytes_accessed=(2 * B * rpb * 128 + 4 * B * 128) * 4,
    )

    y3 = pl.pallas_call(
        _affine_kernel,
        out_shape=jax.ShapeDtypeStruct((B, rpb, 128), x.dtype),
        grid_spec=pltpu.PrefetchScalarGridSpec(
            num_scalar_prefetch=0,
            grid=grid,
            in_specs=[
                pl.BlockSpec((tile_b, tile_r, 128), lambda bi, ri: (bi, ri, 0)),  # x
                pl.BlockSpec((tile_b, 1, 128), lambda bi, ri: (bi, 0, 0)),        # a
                pl.BlockSpec((tile_b, 1, 128), lambda bi, ri: (bi, 0, 0)),        # b
            ],
            out_specs=pl.BlockSpec((tile_b, tile_r, 128), lambda bi, ri: (bi, ri, 0)),
        ),
        compiler_params=pltpu.CompilerParams(
            dimension_semantics=("parallel", "parallel"),
            vmem_limit_bytes=vmem_limit),
        cost_estimate=cost,
    )(x3, a_lane, b_lane)
    return y3.reshape(B, N, D)


# ----------------------------------------------------------------------------
# Context MLP + algebraic collapse of the whole chain (plain XLA, tiny arrays).
# ----------------------------------------------------------------------------
def _context_affine(context, stacked, reverse):
    """context: (B, C); stacked params with leading L axis (application order).
    Returns a_total, b_total: (B, D) such that y = x * a_total + b_total is the
    exact composition of the L per-layer affines, plus sum_s: (B,) = sum_{l,d} s.
    """
    h = jnp.tanh(jnp.einsum("bc,lch->lbh", context, stacked["w1"])
                 + stacked["b1"][:, None, :])
    s = 0.5 * jnp.tanh(jnp.einsum("lbh,lhd->lbd", h, stacked["ws"])
                       + stacked["bs"][:, None, :])
    t = (jnp.einsum("lbh,lhd->lbd", h, stacked["wt"])
         + stacked["bt"][:, None, :])

    L = s.shape[0]
    a_tot = jnp.ones_like(s[0])       # (B, D)
    b_tot = jnp.zeros_like(t[0])
    # Fold the per-layer affines in application order: y = a_l * y + b_l.
    for l in range(L):
        if reverse:
            a_l = jnp.exp(-s[l])
            b_l = -t[l] * a_l
        else:
            a_l = jnp.exp(s[l])
            b_l = t[l]
        a_tot = a_l * a_tot
        b_tot = a_l * b_tot + b_l

    sum_s = jnp.sum(s, axis=(0, 2))   # (B,) total log-det (context-only)
    return a_tot, b_tot, sum_s


class SequentialFlow:
    """JAX/Pallas port of the generalized nn.Sequential flow container."""

    def __init__(self, layer_params_list):
        self.chain = list(layer_params_list)

    def __call__(self, x, context, logpx=None, reverse=False, inds=None,
                 integration_times=None):
        if inds is None:
            if reverse:
                inds = range(len(self.chain) - 1, -1, -1)
            else:
                inds = range(len(self.chain))
        inds = list(inds)
        if not inds:
            return x if logpx is None else (x, logpx)

        # Stack the applied layers' params in application order -> (L, ...).
        stacked = {k: jnp.stack([self.chain[i][k] for i in inds])
                   for k in self.chain[0]}
        a_tot, b_tot, sum_s = _context_affine(context, stacked, reverse)

        y = _apply_affine_pallas(x, a_tot, b_tot)

        if logpx is None:
            return y
        # s is context-only (point-independent), so the chain's total log-det
        # is a per-batch scalar: a cheap XLA broadcast-add (no skinny stores).
        logdet = sum_s[:, None, None]                    # (B, 1, 1)
        new_logpx = logpx + logdet if reverse else logpx - logdet
        return (y, new_logpx)


def make_layer_params(key, context_dim, hidden_dim, feat_dim):
    k1, k2, k3 = jax.random.split(key, 3)
    return {
        "w1": 0.2 * jax.random.normal(k1, (context_dim, hidden_dim), jnp.float32),
        "b1": jnp.zeros((hidden_dim,), jnp.float32),
        "ws": 0.2 * jax.random.normal(k2, (hidden_dim, feat_dim), jnp.float32),
        "bs": jnp.zeros((feat_dim,), jnp.float32),
        "wt": 0.2 * jax.random.normal(k3, (hidden_dim, feat_dim), jnp.float32),
        "bt": jnp.zeros((feat_dim,), jnp.float32),
    }


# ----------------------------------------------------------------------------
# Pure-JAX per-layer reference (for correctness checking only).
# ----------------------------------------------------------------------------
def _reference_forward(x, context, logpx, chain, reverse):
    inds = range(len(chain) - 1, -1, -1) if reverse else range(len(chain))
    for i in inds:
        p = chain[i]
        h = jnp.tanh(context @ p["w1"] + p["b1"])
        s = 0.5 * jnp.tanh(h @ p["ws"] + p["bs"])
        t = h @ p["wt"] + p["bt"]
        logdet = jnp.sum(s, axis=-1)[:, None, None]
        if reverse:
            x = (x - t[:, None, :]) * jnp.exp(-s)[:, None, :]
            logpx = logpx + logdet
        else:
            x = x * jnp.exp(s)[:, None, :] + t[:, None, :]
            logpx = logpx - logdet
    return x, logpx


if __name__ == "__main__":
    B, N, D = 2, 16, 32        # batch, points, feature dim
    C, H = 8, 32               # context dim, hidden dim
    num_layers = 3

    key = jax.random.PRNGKey(0)
    kx, kc, kp = jax.random.split(key, 3)

    x = jax.random.normal(kx, (B, N, D), jnp.float32)
    context = jax.random.normal(kc, (B, C), jnp.float32)
    logpx = jnp.zeros((B, N, 1), jnp.float32)

    layer_keys = jax.random.split(kp, num_layers)
    flow = SequentialFlow([make_layer_params(k, C, H, D) for k in layer_keys])

    # Forward pass with logpx.
    y, logpy = flow(x, context, logpx=logpx, reverse=False)
    y = jax.block_until_ready(y)
    logpy = jax.block_until_ready(logpy)

    # Forward pass without logpx (returns x only).
    y_only = jax.block_until_ready(flow(x, context, logpx=None, reverse=False))

    # Reverse pass should invert the forward pass.
    x_rec, logpx_rec = flow(y, context, logpx=logpy, reverse=True)
    x_rec = jax.block_until_ready(x_rec)
    logpx_rec = jax.block_until_ready(logpx_rec)

    # Check against the per-layer pure-JAX reference (the algebraic collapse
    # reorders exp/mul/add, so small fp differences are expected: atol=1e-4).
    y_ref, logpy_ref = _reference_forward(x, context, logpx, flow.chain,
                                          reverse=False)

    assert y.shape == (B, N, D) and logpy.shape == (B, N, 1)
    assert jnp.allclose(y, y_ref, atol=1e-4, rtol=1e-4)
    assert jnp.allclose(logpy, logpy_ref, atol=1e-4, rtol=1e-4)
    assert jnp.allclose(y, y_only, atol=1e-5)
    assert jnp.allclose(x_rec, x, atol=1e-3)
    assert jnp.allclose(logpx_rec, logpx, atol=1e-3)

    print("KERNEL_OK")
</pallas_src>

<mosaic_0001>
module attributes {stable_mosaic.version = 11 : i64} {
  func.func @_affine_kernel(%arg0: i32, %arg1: i32, %arg2: memref<2x4x128xf32, #tpu.memory_space<vmem>>, %arg3: memref<2x1x128xf32, #tpu.memory_space<vmem>>, %arg4: memref<2x1x128xf32, #tpu.memory_space<vmem>>, %arg5: memref<2x4x128xf32, #tpu.memory_space<vmem>>) attributes {dimension_semantics = [#tpu.dimension_semantics<parallel>, #tpu.dimension_semantics<parallel>], iteration_bounds = array<i64: 1, 1>, scalar_prefetch = 0 : i64, scratch_operands = 0 : i64, tpu.core_type = #tpu.core_type<tc>, window_params = [{transform_indices = @transform_0, window_bounds = array<i64: 2, 4, 128>}, {transform_indices = @transform_1, window_bounds = array<i64: 2, 1, 128>}, {transform_indices = @transform_2, window_bounds = array<i64: 2, 1, 128>}, {transform_indices = @transform_3, window_bounds = array<i64: 2, 4, 128>}]} {
    %c0 = arith.constant 0 : index
    %c0_0 = arith.constant 0 : index
    %c0_1 = arith.constant 0 : index
    %0 = vector.load %arg2[%c0, %c0_0, %c0_1] : memref<2x4x128xf32, #tpu.memory_space<vmem>>, vector<2x4x128xf32>
    %c0_2 = arith.constant 0 : index
    %c0_3 = arith.constant 0 : index
    %c0_4 = arith.constant 0 : index
    %1 = vector.load %arg3[%c0_2, %c0_3, %c0_4] : memref<2x1x128xf32, #tpu.memory_space<vmem>>, vector<2x1x128xf32>
    %2 = vector.broadcast %1 : vector<2x1x128xf32> to vector<2x4x128xf32>
    %3 = arith.mulf %0, %2 : vector<2x4x128xf32>
    %c0_5 = arith.constant 0 : index
    %c0_6 = arith.constant 0 : index
    %c0_7 = arith.constant 0 : index
    %4 = vector.load %arg4[%c0_5, %c0_6, %c0_7] : memref<2x1x128xf32, #tpu.memory_space<vmem>>, vector<2x1x128xf32>
    %5 = vector.broadcast %4 : vector<2x1x128xf32> to vector<2x4x128xf32>
    %6 = arith.addf %3, %5 : vector<2x4x128xf32>
    %c0_8 = arith.constant 0 : index
    %c0_9 = arith.constant 0 : index
    %c0_10 = arith.constant 0 : index
    %7 = vector.load %arg5[%c0_8, %c0_9, %c0_10] : memref<2x4x128xf32, #tpu.memory_space<vmem>>, vector<2x4x128xf32>
    tpu.vector_store %arg5[%c0_8, %c0_9, %c0_10], %6 {strides = array<i32>} : memref<2x4x128xf32, #tpu.memory_space<vmem>>, vector<2x4x128xf32>,
    return
  }
  func.func @transform_0(%arg0: i32, %arg1: i32) -> (i32, i32, i32) {
    %c0_i32 = arith.constant 0 : i32
    %c0_i32_0 = arith.constant 0 : i32
    return %arg0, %arg1, %c0_i32 : i32, i32, i32
  }
  func.func @transform_1(%arg0: i32, %arg1: i32) -> (i32, i32, i32) {
    %c0_i32 = arith.constant 0 : i32
    %c0_i32_0 = arith.constant 0 : i32
    %c0_i32_1 = arith.constant 0 : i32
    return %arg0, %c0_i32, %c0_i32_0 : i32, i32, i32
  }
  func.func @transform_2(%arg0: i32, %arg1: i32) -> (i32, i32, i32) {
    %c0_i32 = arith.constant 0 : i32
    %c0_i32_0 = arith.constant 0 : i32
    %c0_i32_1 = arith.constant 0 : i32
    return %arg0, %c0_i32, %c0_i32_0 : i32, i32, i32
  }
  func.func @transform_3(%arg0: i32, %arg1: i32) -> (i32, i32, i32) {
    %c0_i32 = arith.constant 0 : i32
    %c0_i32_0 = arith.constant 0 : i32
    return %arg0, %arg1, %c0_i32 : i32, i32, i32
  }
}

</mosaic_0001>

<llo_original>
// kernel: tpu_custom_call.1
$region0: #{tpu_custom_call.1}
  #allocation0 [shape = 'u32[]', space=smem, size = 0x4, offset = 0x4, fixed_abs, tag = 'smem constant byte address 0x4 - core index']
  #allocation1 [shape = 'u32[144,128]{1,0:T(1,128)}', space=vmem, size = 0x12000, scoped, tag = 'internal scratch']
  %s0 = inlined_call_operand.hbm [shape: f32[2,4,128], index: 0, kind: input, shape index: {}]
  %s1 = inlined_call_operand.vmem [shape: f32[2,1,128], index: 1, kind: input, shape index: {}]
  %s2 = inlined_call_operand.vmem [shape: f32[2,1,128], index: 2, kind: input, shape index: {}]
  %s3 = inlined_call_operand.hbm [shape: f32[2,4,128], index: 3, kind: output, shape index: {}]
  %s4 = sld [smem:[#allocation0]]
  $region26: #{tpu_custom_call.1} parent=0
    _
  %s6 = ssub.s32 1, %s4
  %s7 = scalar_select 0, %s6, %s4
  $region1: #{tpu_custom_call.1} parent=0
    #allocation2 [shape = 'u8[4096]{0}', space=vmem, size = 0x1000, scoped, tag = 'input window, operand 0, single buffered']
    #allocation3 [shape = 's32[1]{0}', space=sflag, size = 0x4, scoped, tag = 'scoped memory for tpu_custom_call.1']
    #allocation4 [shape = 's32[1]{0}', space=sflag, size = 0x4, scoped, tag = 'scoped memory for tpu_custom_call.1']
    #allocation5 [shape = 'u8[4096]{0}', space=vmem, size = 0x1000, scoped, tag = 'output window, operand 0, single buffered']
    %8 = vsyncpa [#allocation3], 0
    %9 = vsyncpa [#allocation4], 0
    // Predicated region
    $region2: #{tpu_custom_call.1} parent=1 // pred_check
      _
    $region3: #{tpu_custom_call.1} parent=1 // pred_check_branch
      %11 = sbr.rel (0) target = $region5
    $region4: #{tpu_custom_call.1} parent=1 // pred_region
      %s13 = ssub.s32 128, 128
      %14 = vsyncadd [#allocation3], %s13
      %s15 = sshll.u32 [#allocation2], 4
      %s16 = int_to_ptr.vmem [resolvable:$true] %s15
      %21 = dma.hbm_to_vmem [thread:$0]  %s0, 128, %s16, [#allocation3], 64, 64, 4
    $region5: #{tpu_custom_call.1} parent=1 // pred_fallthru
      _
    // Predicated region
    $region6: #{tpu_custom_call.1} parent=1 // pred_check
      _
    $region7: #{tpu_custom_call.1} parent=1 // pred_check_branch
      %23 = sbr.rel (0) target = $region9
    $region8: #{tpu_custom_call.1} parent=1 // pred_region
      _
    $region9: #{tpu_custom_call.1} parent=1 // pred_fallthru
      _
    // Predicated region
    $region10: #{tpu_custom_call.1} parent=1 // pred_check
      _
    $region11: #{tpu_custom_call.1} parent=1 // pred_check_branch
      %25 = sbr.rel (0) target = $region13
    $region12: #{tpu_custom_call.1} parent=1 // pred_region
      _
    $region13: #{tpu_custom_call.1} parent=1 // pred_fallthru
      _
    // Predicated region
    $region14: #{tpu_custom_call.1} parent=1 // pred_check
      _
    $region15: #{tpu_custom_call.1} parent=1 // pred_check_branch
      %27 = sbr.rel (0) target = $region17
    $region16: #{tpu_custom_call.1} parent=1 // pred_region
      %28 = dma.done [#allocation3], 128
    $region17: #{tpu_custom_call.1} parent=1 // pred_fallthru
      _
    %v29 = vld [vmem:[#allocation2] sm:$0xf]
    %v30 = vld [vmem:[#allocation2 + $0x4] sm:$0xf]
    %v31 = vld [vmem:[%s1] sm:$0x1]
    %v32 = vld [vmem:[%s1 + $0x1] sm:$0x1]
    %v35 = vlaneseq
    %v36 = vshrl.u32 %v35, 7
    %v37 = vsub.s32 0, %v36
    %v38 = vrot.slane %v31, %v37
    %v39 = vlaneseq
    %v40 = vshrl.u32 %v39, 7
    %v41 = vsub.s32 0, %v40
    %v42 = vrot.slane %v32, %v41
    %v45 = vmul.f32 %v29, %v38
    %v46 = vmul.f32 %v30, %v42
    %v47 = vld [vmem:[%s2] sm:$0x1]
    %v48 = vld [vmem:[%s2 + $0x1] sm:$0x1]
    %v51 = vlaneseq
    %v52 = vshrl.u32 %v51, 7
    %v53 = vsub.s32 0, %v52
    %v54 = vrot.slane %v47, %v53
    %v55 = vlaneseq
    %v56 = vshrl.u32 %v55, 7
    %v57 = vsub.s32 0, %v56
    %v58 = vrot.slane %v48, %v57
    %v61 = vadd.f32 %v45, %v54
    %v62 = vadd.f32 %v46, %v58
    %63 = vst [vmem:[#allocation5] sm:$0xf] %v61
    %64 = vst [vmem:[#allocation5 + $0x4] sm:$0xf] %v62
    // Predicated region
    $region18: #{tpu_custom_call.1} parent=1 // pred_check
      _
    $region19: #{tpu_custom_call.1} parent=1 // pred_check_branch
      %66 = sbr.rel (0) target = $region21
    $region20: #{tpu_custom_call.1} parent=1 // pred_region
      %s68 = ssub.s32 128, 128
      %69 = vsyncadd [#allocation4], %s68
      %s70 = sshll.u32 [#allocation5], 4
      %s71 = int_to_ptr.vmem [resolvable:$true] %s70
      %76 = dma.vmem_to_hbm [thread:$0]  %s71, 128, %s3, [#allocation4], 64, 64, 4
    $region21: #{tpu_custom_call.1} parent=1 // pred_fallthru
      _
    // Predicated region
    $region22: #{tpu_custom_call.1} parent=1 // pred_check
      _
    $region23: #{tpu_custom_call.1} parent=1 // pred_check_branch
      %78 = sbr.rel (0) target = $region25
    $region24: #{tpu_custom_call.1} parent=1 // pred_region
      %79 = dma.done [#allocation4], 128
    $region25: #{tpu_custom_call.1} parent=1 // pred_fallthru
      _
    %80 = vsyncpa [#allocation3], 1
    %81 = vsyncpa [#allocation4], 1

</llo_original>
